<compile_context>
chip_gen: v5e
topology: v5e:2x2
jax: 0.10.0
libtpu: 0.0.40
codegen_flags: <defaults>
</compile_context>

<pallas_src>
import jax
import jax.numpy as jnp
from jax import lax
from jax.experimental import pallas as pl
from jax.experimental.pallas import tpu as pltpu


def channel_attention_kernel(x_ref, w1_ref, w2_ref, o_ref):
    # x_ref / o_ref: (Bt, C, HW)   w1_ref: (Cr, C)   w2_ref: (C, Cr)
    x = x_ref[...]                                        # native dtype
    hw = x.shape[-1]

    # Global average / max pooling over the spatial (lane) axis.
    # f32 accumulation for the sum; max is exact, cast after.
    avg = jnp.sum(x, axis=-1, dtype=jnp.float32) * (1.0 / hw)   # (Bt, C)
    mx = jnp.max(x, axis=-1).astype(jnp.float32)                # (Bt, C)

    w1 = w1_ref[...].astype(jnp.float32)                  # (Cr, C)
    w2 = w2_ref[...].astype(jnp.float32)                  # (C, Cr)

    # Shared MLP.  Contract on the C / Cr axes directly (no transposes).
    # Second conv is linear => sum the two ReLU'd branches, one final matmul.
    dn_c = (((1,), (1,)), ((), ()))                       # lhs dim1 . rhs dim1
    h_avg = lax.dot_general(avg, w1, dn_c,
                            preferred_element_type=jnp.float32)  # (Bt, Cr)
    h_max = lax.dot_general(mx, w1, dn_c,
                            preferred_element_type=jnp.float32)  # (Bt, Cr)
    h = jnp.maximum(h_avg, 0.0) + jnp.maximum(h_max, 0.0)        # (Bt, Cr)
    logits = lax.dot_general(h, w2, dn_c,
                             preferred_element_type=jnp.float32)  # (Bt, C)
    gate = jax.nn.sigmoid(logits)                                 # (Bt, C)

    # Scale x by the gate, broadcast over the spatial axis; write straight to
    # the output block (no intermediate full-size temp).
    o_ref[...] = (x * gate[:, :, None].astype(x.dtype)).astype(o_ref.dtype)


def channel_attention(x, w1, w2, *, max_block_bytes=8 * 1024 * 1024):
    """x: (B, C, H, W) NCHW.  w1: (C//r, C).  w2: (C, C//r)."""
    B, C, H, W = x.shape
    Cr = w1.shape[0]
    HW = H * W
    x2 = x.reshape(B, C, HW)

    # --- choose batch-tile size -------------------------------------------
    bytes_per_batch = C * HW * x.dtype.itemsize
    # Fold multiple batch elements per block when per-batch slabs are tiny,
    # but cap the block so double-buffered in+out fits VMEM on all chips.
    bt = max(1, min(B, max_block_bytes // max(bytes_per_batch, 1)))
    while B % bt != 0:
        bt -= 1
    # Keep >= 2 grid steps when possible (v7x has 2 TensorCores per chip).
    if B // bt < 2 and bt > 1:
        bt = max(1, B // 2)
        while B % bt != 0:
            bt -= 1
    grid = (B // bt,)

    # --- VMEM budget: in + out blocks, double-buffered, + weights/headroom --
    block_bytes = bt * bytes_per_batch
    vmem_limit = 4 * block_bytes + 4 * 1024 * 1024
    vmem_limit = int(min(max(vmem_limit, 16 * 1024 * 1024), 100 * 1024 * 1024))

    y2 = pl.pallas_call(
        channel_attention_kernel,
        out_shape=jax.ShapeDtypeStruct((B, C, HW), x.dtype),
        grid_spec=pltpu.PrefetchScalarGridSpec(
            num_scalar_prefetch=0,
            grid=grid,
            in_specs=[
                pl.BlockSpec((bt, C, HW), lambda i: (i, 0, 0)),
                pl.BlockSpec((Cr, C), lambda i: (0, 0)),
                pl.BlockSpec((C, Cr), lambda i: (0, 0)),
            ],
            out_specs=pl.BlockSpec((bt, C, HW), lambda i: (i, 0, 0)),
        ),
        compiler_params=pltpu.CompilerParams(
            dimension_semantics=("parallel",),
            vmem_limit_bytes=vmem_limit,
        ),
    )(x2, w1, w2)
    return y2.reshape(B, C, H, W)


def channel_attention_ref(x, w1, w2):
    """Pure-JAX reference mirroring the PyTorch module."""
    xf = x.astype(jnp.float32)
    avg = jnp.mean(xf, axis=(2, 3))                       # (B, C)
    mx = jnp.max(xf, axis=(2, 3))                         # (B, C)

    def fc(v):                                            # v: (B, C)
        h = jnp.maximum(v @ w1.T, 0.0)                    # (B, Cr)
        return h @ w2.T                                   # (B, C)

    gate = jax.nn.sigmoid(fc(avg) + fc(mx))               # (B, C)
    return (xf * gate[:, :, None, None]).astype(x.dtype)


if __name__ == "__main__":
    B, C, H, W = 2, 32, 16, 16
    reduction = 8
    Cr = C // reduction

    key = jax.random.PRNGKey(0)
    kx, k1, k2 = jax.random.split(key, 3)

    x = jax.random.normal(kx, (B, C, H, W), dtype=jnp.float32)
    # Conv2d(C, C//r, 1, bias=False).weight: (C//r, C, 1, 1) -> (C//r, C)
    w1 = jax.random.normal(k1, (Cr, C), dtype=jnp.float32) * 0.1
    # Conv2d(C//r, C, 1, bias=False).weight: (C, C//r, 1, 1) -> (C, C//r)
    w2 = jax.random.normal(k2, (C, Cr), dtype=jnp.float32) * 0.1

    y = channel_attention(x, w1, w2)
    y = jax.block_until_ready(y)

    y_ref = channel_attention_ref(x, w1, w2)
    assert y.shape == (B, C, H, W)
    assert jnp.allclose(y, y_ref, atol=1e-5, rtol=1e-5), "mismatch vs reference"

    print("KERNEL_OK")
</pallas_src>

<mosaic_0001>
module attributes {stable_mosaic.version = 11 : i64} {
  func.func @channel_attention_kernel(%arg0: i32, %arg1: memref<1x32x256xf32, #tpu.memory_space<vmem>>, %arg2: memref<4x32xf32, #tpu.memory_space<vmem>>, %arg3: memref<32x4xf32, #tpu.memory_space<vmem>>, %arg4: memref<1x32x256xf32, #tpu.memory_space<vmem>>) attributes {dimension_semantics = [#tpu.dimension_semantics<parallel>], iteration_bounds = array<i64: 2>, scalar_prefetch = 0 : i64, scratch_operands = 0 : i64, tpu.core_type = #tpu.core_type<tc>, window_params = [{transform_indices = @transform_0, window_bounds = array<i64: 1, 32, 256>}, {pipeline_mode = #tpu.pipeline_mode<synchronous>, transform_indices = @transform_1, window_bounds = array<i64: 4, 32>}, {pipeline_mode = #tpu.pipeline_mode<synchronous>, transform_indices = @transform_2, window_bounds = array<i64: 32, 4>}, {transform_indices = @transform_3, window_bounds = array<i64: 1, 32, 256>}]} {
    %c0 = arith.constant 0 : index
    %c0_0 = arith.constant 0 : index
    %c0_1 = arith.constant 0 : index
    %0 = vector.load %arg1[%c0, %c0_0, %c0_1] : memref<1x32x256xf32, #tpu.memory_space<vmem>>, vector<1x32x256xf32>
    %cst = arith.constant dense<0.000000e+00> : vector<1x32xf32>
    %1 = vector.multi_reduction <add>, %0, %cst [2] : vector<1x32x256xf32> to vector<1x32xf32>
    %cst_2 = arith.constant 3.906250e-03 : f32
    %2 = vector.broadcast %cst_2 : f32 to vector<1x32xf32>
    %3 = arith.mulf %1, %2 : vector<1x32xf32>
    %cst_3 = arith.constant dense<0xFF800000> : vector<1x32xf32>
    %4 = vector.multi_reduction <maximumf>, %0, %cst_3 [2] : vector<1x32x256xf32> to vector<1x32xf32>
    %c0_4 = arith.constant 0 : index
    %c0_5 = arith.constant 0 : index
    %5 = vector.load %arg2[%c0_4, %c0_5] : memref<4x32xf32, #tpu.memory_space<vmem>>, vector<4x32xf32>
    %c0_6 = arith.constant 0 : index
    %c0_7 = arith.constant 0 : index
    %6 = vector.load %arg3[%c0_6, %c0_7] : memref<32x4xf32, #tpu.memory_space<vmem>>, vector<32x4xf32>
    %cst_8 = arith.constant dense<0.000000e+00> : vector<1x4xf32>
    %7 = tpu.matmul %3, %5, %cst_8 {dimension_numbers = #tpu.dot_dimension_numbers<[1], [1], [0], [0], [0, 0, 1, 0], [], []>} : vector<1x32xf32>, vector<4x32xf32>, vector<1x4xf32> -> vector<1x4xf32>
    %cst_9 = arith.constant dense<0.000000e+00> : vector<1x4xf32>
    %8 = tpu.matmul %4, %5, %cst_9 {dimension_numbers = #tpu.dot_dimension_numbers<[1], [1], [0], [0], [0, 0, 1, 0], [], []>} : vector<1x32xf32>, vector<4x32xf32>, vector<1x4xf32> -> vector<1x4xf32>
    %cst_10 = arith.constant 0.000000e+00 : f32
    %9 = vector.broadcast %cst_10 : f32 to vector<1x4xf32>
    %10 = arith.maximumf %7, %9 : vector<1x4xf32>
    %cst_11 = arith.constant 0.000000e+00 : f32
    %11 = vector.broadcast %cst_11 : f32 to vector<1x4xf32>
    %12 = arith.maximumf %8, %11 : vector<1x4xf32>
    %13 = arith.addf %10, %12 : vector<1x4xf32>
    %cst_12 = arith.constant dense<0.000000e+00> : vector<1x32xf32>
    %14 = tpu.matmul %13, %6, %cst_12 {dimension_numbers = #tpu.dot_dimension_numbers<[1], [1], [0], [0], [0, 0, 1, 0], [], []>} : vector<1x4xf32>, vector<32x4xf32>, vector<1x32xf32> -> vector<1x32xf32>
    %15 = arith.negf %14 : vector<1x32xf32>
    %16 = math.exp %15 : vector<1x32xf32>
    %cst_13 = arith.constant 1.000000e+00 : f32
    %17 = vector.broadcast %cst_13 : f32 to vector<1x32xf32>
    %18 = arith.addf %17, %16 : vector<1x32xf32>
    %19 = arith.divf %17, %18 : vector<1x32xf32>
    %20 = vector.shape_cast %19 : vector<1x32xf32> to vector<1x32x1xf32>
    %21 = vector.broadcast %20 : vector<1x32x1xf32> to vector<1x32x256xf32>
    %22 = arith.mulf %0, %21 : vector<1x32x256xf32>
    %c0_14 = arith.constant 0 : index
    %c0_15 = arith.constant 0 : index
    %c0_16 = arith.constant 0 : index
    %23 = vector.load %arg4[%c0_14, %c0_15, %c0_16] : memref<1x32x256xf32, #tpu.memory_space<vmem>>, vector<1x32x256xf32>
    tpu.vector_store %arg4[%c0_14, %c0_15, %c0_16], %22 {strides = array<i32>} : memref<1x32x256xf32, #tpu.memory_space<vmem>>, vector<1x32x256xf32>,
    return
  }
  func.func @transform_0(%arg0: i32) -> (i32, i32, i32) {
    %c0_i32 = arith.constant 0 : i32
    %c0_i32_0 = arith.constant 0 : i32
    %c0_i32_1 = arith.constant 0 : i32
    return %arg0, %c0_i32, %c0_i32_0 : i32, i32, i32
  }
  func.func @transform_1(%arg0: i32) -> (i32, i32) {
    %c0_i32 = arith.constant 0 : i32
    %c0_i32_0 = arith.constant 0 : i32
    %c0_i32_1 = arith.constant 0 : i32
    return %c0_i32, %c0_i32_0 : i32, i32
  }
  func.func @transform_2(%arg0: i32) -> (i32, i32) {
    %c0_i32 = arith.constant 0 : i32
    %c0_i32_0 = arith.constant 0 : i32
    %c0_i32_1 = arith.constant 0 : i32
    return %c0_i32, %c0_i32_0 : i32, i32
  }
  func.func @transform_3(%arg0: i32) -> (i32, i32, i32) {
    %c0_i32 = arith.constant 0 : i32
    %c0_i32_0 = arith.constant 0 : i32
    %c0_i32_1 = arith.constant 0 : i32
    return %arg0, %c0_i32, %c0_i32_0 : i32, i32, i32
  }
}

</mosaic_0001>

<llo_original>
// kernel: tpu_custom_call.1
$region0: #{tpu_custom_call.1}
  #allocation0 [shape = 'u32[]', space=smem, size = 0x4, offset = 0x4, fixed_abs, tag = 'smem constant byte address 0x4 - core index']
  #allocation1 [shape = 'u32[72,128]{1,0:T(1,128)}', space=vmem, size = 0x9000, scoped, tag = 'internal scratch']
  %s0 = inlined_call_operand.hbm [shape: f32[2,32,256], index: 0, kind: input, shape index: {}]
  %s1 = inlined_call_operand.vmem [shape: f32[4,32], index: 1, kind: input, shape index: {}]
  %s2 = inlined_call_operand.vmem [shape: f32[32,4], index: 2, kind: input, shape index: {}]
  %s3 = inlined_call_operand.hbm [shape: f32[2,32,256], index: 3, kind: output, shape index: {}]
  %s4 = sld [smem:[#allocation0]]
  $region49: #{tpu_custom_call.1} parent=0
    _
  %s6 = ssub.s32 1, %s4
  %s7 = scalar_select 0, %s6, %s4
  $region1: #{tpu_custom_call.1} parent=0
    #allocation2 [shape = 'u8[65536]{0}', space=vmem, size = 0x10000, scoped, tag = 'input window, operand 0']
    #allocation3 [shape = 's32[2]{0}', space=sflag, size = 0x8, scoped, tag = 'scoped memory for tpu_custom_call.1']
    #allocation4 [shape = 's32[2]{0}', space=sflag, size = 0x8, scoped, tag = 'scoped memory for tpu_custom_call.1']
    #allocation5 [shape = 'u8[65536]{0}', space=vmem, size = 0x10000, scoped, tag = 'output window, operand 0']
    %8 = vsyncpa [#allocation3], 0
    %s9 = scalar_lea.sflag [#allocation3], 1
    %10 = vsyncpa %s9, 0
    %11 = vsyncpa [#allocation4], 0
    %s12 = scalar_lea.sflag [#allocation4], 1
    %13 = vsyncpa %s12, 0
    loop: start=0, step=1, limit=4
    $region2: #{tpu_custom_call.1} parent=1 // loop_pre_header
      _
    $region3: #{tpu_custom_call.1} parent=1 // loop_header
      %s15 = sphi 0, %s19
      %p16 = scmp.ge.s32.totalorder %s15, 4
      %s25 = sphi 0, %s27
      %s28 = sphi 0, %s25
      %s29 = sphi 0, %s28
      %s45 = sphi 0, %s29
      %s49 = sphi 0, %s49
      %s51 = sphi 0, %s49
      %s52 = sphi 0, %s51
      %s66 = sphi 0, %s52
      %s70 = sphi 0, %s70
      %s72 = sphi 0, %s70
      %s73 = sphi 0, %s72
      %s87 = sphi 0, %s73
      %s93 = sphi 0, %s95
      %s96 = sphi 0, %s93
      %s97 = sphi 0, %s96
      %s113 = sphi 0, %s97
    $region4: #{tpu_custom_call.1} parent=1 // loop_header_branch
      %18 = sbr.rel (%p16) target = $region8
    $region5: #{tpu_custom_call.1} parent=1 // loop_body
      %s20 = ssub.s32 %s15, 1
      %s21 = ssub.s32 %s15, 2
      %s22 = sadd.s32 %s15, 1
      %s23 = ssub.s32 %s15, %s22
      %p24 = scmp.eq.s32.totalorder %s23, 0
      %s26 = sadd.s32 %s25, 1
      %s27 = scalar_select %p24, %s25, %s26
      %p30 = pneg %p24
      %p31 = scmp.eq.s32.totalorder %s15, 1
      %p32 = por %p30, %p31
      %p33 = scmp.ne.s32.totalorder %s25, %s28
      %p34 = scmp.eq.s32.totalorder %s15, 0
      %p35 = por %p33, %p34
      %p36 = scmp.ne.s32.totalorder %s25, %s28
      %p37 = scmp.eq.s32.totalorder %s20, 1
      %p38 = por %p36, %p37
      %p39 = scmp.ne.s32.totalorder %s28, %s29
      %p40 = scmp.eq.s32.totalorder %s20, 0
      %p41 = por %p39, %p40
      %p42 = scmp.ne.s32.totalorder %s28, %s29
      %p43 = scmp.eq.s32.totalorder %s21, 1
      %p44 = por %p42, %p43
      %p46 = scmp.ne.s32.totalorder %s29, %s45
      %p47 = scmp.eq.s32.totalorder %s21, 0
      %p48 = por %p46, %p47
      %s50 = sadd.s32 %s49, 1
      %p53 = scmp.eq.s32.totalorder %s15, 1
      %p54 = scmp.ne.s32.totalorder %s49, %s51
      %p55 = scmp.eq.s32.totalorder %s15, 0
      %p56 = por %p54, %p55
      %p57 = scmp.ne.s32.totalorder %s49, %s51
      %p58 = scmp.eq.s32.totalorder %s20, 1
      %p59 = por %p57, %p58
      %p60 = scmp.ne.s32.totalorder %s51, %s52
      %p61 = scmp.eq.s32.totalorder %s20, 0
      %p62 = por %p60, %p61
      %p63 = scmp.ne.s32.totalorder %s51, %s52
      %p64 = scmp.eq.s32.totalorder %s21, 1
      %p65 = por %p63, %p64
      %p67 = scmp.ne.s32.totalorder %s52, %s66
      %p68 = scmp.eq.s32.totalorder %s21, 0
      %p69 = por %p67, %p68
      %s71 = sadd.s32 %s70, 1
      %p74 = scmp.eq.s32.totalorder %s15, 1
      %p75 = scmp.ne.s32.totalorder %s70, %s72
      %p76 = scmp.eq.s32.totalorder %s15, 0
      %p77 = por %p75, %p76
      %p78 = scmp.ne.s32.totalorder %s70, %s72
      %p79 = scmp.eq.s32.totalorder %s20, 1
      %p80 = por %p78, %p79
      %p81 = scmp.ne.s32.totalorder %s72, %s73
      %p82 = scmp.eq.s32.totalorder %s20, 0
      %p83 = por %p81, %p82
      %p84 = scmp.ne.s32.totalorder %s72, %s73
      %p85 = scmp.eq.s32.totalorder %s21, 1
      %p86 = por %p84, %p85
      %p88 = scmp.ne.s32.totalorder %s73, %s87
      %p89 = scmp.eq.s32.totalorder %s21, 0
      %p90 = por %p88, %p89
      %s91 = ssub.s32 %s15, %s22
      %p92 = scmp.eq.s32.totalorder %s91, 0
      %s94 = sadd.s32 %s93, 1
      %s95 = scalar_select %p92, %s93, %s94
      %p98 = pneg %p92
      %p99 = scmp.eq.s32.totalorder %s15, 1
      %p100 = por %p98, %p99
      %p101 = scmp.ne.s32.totalorder %s93, %s96
      %p102 = scmp.eq.s32.totalorder %s15, 0
      %p103 = por %p101, %p102
      %p104 = scmp.ne.s32.totalorder %s93, %s96
      %p105 = scmp.eq.s32.totalorder %s20, 1
      %p106 = por %p104, %p105
      %p107 = scmp.ne.s32.totalorder %s96, %s97
      %p108 = scmp.eq.s32.totalorder %s20, 0
      %p109 = por %p107, %p108
      %p110 = scmp.ne.s32.totalorder %s96, %s97
      %p111 = scmp.eq.s32.totalorder %s21, 1
      %p112 = por %p110, %p111
      %p114 = scmp.ne.s32.totalorder %s97, %s113
      %p115 = scmp.eq.s32.totalorder %s21, 0
      %p116 = por %p114, %p115
      %p117 = scmp.le.s32.totalorder 1, %s15
      %p118 = scmp.lt.s32.totalorder %s15, 3
      %p119 = pnand %p117, %p118
      %p120 = pneg %p119
      // Predicated region
      $region9: #{tpu_custom_call.1} parent=5 // pred_check
        _
      $region10: #{tpu_custom_call.1} parent=5 // pred_check_branch
        %122 = sbr.rel (%p119) target = $region12
      $region11: #{tpu_custom_call.1} parent=5 // pred_region
        %s123 = ssub.s32 %s15, 1
        // Predicated region
        $region13: #{tpu_custom_call.1} parent=11 // pred_check
          %p124 = pneg %p62
        $region14: #{tpu_custom_call.1} parent=11 // pred_check_branch
          %126 = sbr.rel (%p124) target = $region16
        $region15: #{tpu_custom_call.1} parent=11 // pred_region
          _
        $region16: #{tpu_custom_call.1} parent=11 // pred_fallthru
          _
        // Predicated region
        $region17: #{tpu_custom_call.1} parent=11 // pred_check
          %p127 = pneg %p83
        $region18: #{tpu_custom_call.1} parent=11 // pred_check_branch
          %129 = sbr.rel (%p127) target = $region20
        $region19: #{tpu_custom_call.1} parent=11 // pred_region
          _
        $region20: #{tpu_custom_call.1} parent=11 // pred_fallthru
          _
      $region12: #{tpu_custom_call.1} parent=5 // pred_fallthru
        _
      %p130 = scmp.lt.s32.totalorder %s15, 2
      // Predicated region
      $region21: #{tpu_custom_call.1} parent=5 // pred_check
        %p131 = pneg %p130
      $region22: #{tpu_custom_call.1} parent=5 // pred_check_branch
        %133 = sbr.rel (%p131) target = $region24
      $region23: #{tpu_custom_call.1} parent=5 // pred_region
        // Predicated region
        $region25: #{tpu_custom_call.1} parent=23 // pred_check
          %p134 = pneg %p35
        $region26: #{tpu_custom_call.1} parent=23 // pred_check_branch
          %136 = sbr.rel (%p134) target = $region28
        $region27: #{tpu_custom_call.1} parent=23 // pred_region
          %s137 = sand.u32 %s25, 1
          %s138 = scalar_lea.sflag [#allocation3], %s137
          %s139 = sand.u32 %s25, 1
          %s140 = smul.addr %s139, 64
          %s141 = scalar_lea.vmem [#allocation2], %s140
          %143 = vsyncadd %s138, 0
          %s144 = smul.addr %s15, 8
          %s145 = smul.addr %s144, 8
          %s146 = scalar_lea.hbm %s0, %s145
          %s147 = sshll.u32 %s146, 4
          %s148 = int_to_ptr.hbm [resolvable:$true] %s147
          %s149 = sshll.u32 %s141, 4
          %s150 = int_to_ptr.vmem [resolvable:$true] %s149
          %155 = dma.hbm_to_vmem [thread:$0]  %s148, 1024, %s150, %s138, 256, 256, 16
        $region28: #{tpu_custom_call.1} parent=23 // pred_fallthru
          _
      $region24: #{tpu_custom_call.1} parent=5 // pred_fallthru
        _
      %p156 = scmp.le.s32.totalorder 1, %s15
      %p157 = scmp.lt.s32.totalorder %s15, 3
      %p158 = pnand %p156, %p157
      %p159 = pneg %p158
      // Predicated region
      $region29: #{tpu_custom_call.1} parent=5 // pred_check
        _
      $region30: #{tpu_custom_call.1} parent=5 // pred_check_branch
        %161 = sbr.rel (%p158) target = $region32
      $region31: #{tpu_custom_call.1} parent=5 // pred_region
        %s162 = ssub.s32 %s15, 1
        %s163 = sand.u32 %s28, 1
        %s164 = scalar_lea.sflag [#allocation3], %s163
        %s165 = sand.u32 %s28, 1
        %s166 = smul.addr %s165, 64
        %s167 = scalar_lea.vmem [#allocation2], %s166
        // Predicated region
        $region33: #{tpu_custom_call.1} parent=31 // pred_check
          %p168 = pneg %p41
        $region34: #{tpu_custom_call.1} parent=31 // pred_check_branch
          %170 = sbr.rel (%p168) target = $region36
        $region35: #{tpu_custom_call.1} parent=31 // pred_region
          %172 = dma.done %s164, 1024
        $region36: #{tpu_custom_call.1} parent=31 // pred_fallthru
          _
        %s173 = sand.u32 %s28, 1
        %s174 = scalar_lea.sflag [#allocation3], %s173
        %s175 = sand.u32 %s28, 1
        %s176 = smul.addr %s175, 64
        %s177 = scalar_lea.vmem [#allocation2], %s176
        %p178 = pneg %p41
        %p179 = pneg %p38
        %p180 = pneg %p62
        %p181 = pneg %p59
        %p182 = pneg %p83
        %p183 = pneg %p80
        %p184 = pneg %p109
        %p185 = pneg %p106
        %s186 = sand.u32 %s96, 1
        %s187 = scalar_lea.sflag [#allocation4], %s186
        %s188 = sand.u32 %s96, 1
        %s189 = smul.addr %s188, 64
        %s190 = scalar_lea.vmem [#allocation5], %s189
        %v191 = vld [vmem:[%s167] sm:$0xff]
        %v192 = vld [vmem:[%s167 + $0x8] sm:$0xff]
        %v193 = vld [vmem:[%s167 + $0x10] sm:$0xff]
        %v194 = vld [vmem:[%s167 + $0x18] sm:$0xff]
        %v195 = vld [vmem:[%s167 + $0x20] sm:$0xff]
        %v196 = vld [vmem:[%s167 + $0x28] sm:$0xff]
        %v197 = vld [vmem:[%s167 + $0x30] sm:$0xff]
        %v198 = vld [vmem:[%s167 + $0x38] sm:$0xff]
        %v199 = vadd.f32 %v191, %v192
        %200 = vadd.xlane.f32.xlu0 %v199
        %v201 = vpop.xlane.xlu0 %200
        %v202 = vadd.f32 %v193, %v194
        %203 = vadd.xlane.f32.xlu0 %v202
        %v204 = vpop.xlane.xlu0 %203
        %v205 = vadd.f32 %v195, %v196
        %206 = vadd.xlane.f32.xlu0 %v205
        %v207 = vpop.xlane.xlu0 %206
        %v208 = vadd.f32 %v197, %v198
        %209 = vadd.xlane.f32.xlu0 %v208
        %v210 = vpop.xlane.xlu0 %209
        %v211 = vmul.f32 %v201, 0.00390625
        %v212 = vmul.f32 %v204, 0.00390625
        %v213 = vmul.f32 %v207, 0.00390625
        %v214 = vmul.f32 %v210, 0.00390625
        %v215 = vmax.f32 %v191, %v192
        %216 = vmax.xlane.f32.xlu0 %v215
        %v217 = vpop.xlane.xlu0 %216
        %v218 = vmax.f32 %v193, %v194
        %219 = vmax.xlane.f32.xlu0 %v218
        %v220 = vpop.xlane.xlu0 %219
        %v221 = vmax.f32 %v195, %v196
        %222 = vmax.xlane.f32.xlu0 %v221
        %v223 = vpop.xlane.xlu0 %222
        %v224 = vmax.f32 %v197, %v198
        %225 = vmax.xlane.f32.xlu0 %v224
        %v226 = vpop.xlane.xlu0 %225
        %v227 = vld [vmem:[%s1] sm:$0xf]
        %v228 = vld [vmem:[%s2] sm:$0xff]
        %v229 = vld [vmem:[%s2 + $0x8] sm:$0xff]
        %v230 = vld [vmem:[%s2 + $0x10] sm:$0xff]
        %v231 = vld [vmem:[%s2 + $0x18] sm:$0xff]
        %v236 = vlaneseq
        %v237 = vand.u32 %v236, 127
        %v238 = vperm.slane %v211, %v237
        %v239 = vadd.s32 %v237, 4294967288
        %v240 = vperm.slane %v212, %v239
        %vm241 = vcmask 130112
        %v242 = vsel %vm241, %v240, %v238
        %v243 = vadd.s32 %v237, 4294967280
        %v244 = vperm.slane %v213, %v243
        %vm245 = vcmask 195712
        %v246 = vsel %vm245, %v244, %v242
        %v247 = vadd.s32 %v237, 4294967272
        %v248 = vperm.slane %v214, %v247
        %vm249 = vcmask 261312
        %v250 = vsel %vm249, %v248, %v246
        %vm251 = vcmask 261120
        %v252 = vsel %vm251, %v250, 0
        %v255 = vsel %vm251, %v227, 0
        %257 = vmatpush.xpose.msra.mxu0 0.0
        %258 = vmatpush.xpose.msra.mxu0 0.0
        %259 = vmatpush.xpose.msra.mxu0 0.0
        %260 = vmatpush.xpose.msra.mxu0 0.0
        %261 = vmatpush.xpose.msra.mxu0 0.0
        %262 = vmatpush.xpose.msra.mxu0 0.0
        %263 = vmatpush.xpose.msra.mxu0 0.0
        %264 = vmatpush.xpose.msra.mxu0 0.0
        %265 = vmatpush.xpose.msra.mxu0 0.0
        %266 = vmatpush.xpose.msra.mxu0 0.0
        %267 = vmatpush.xpose.msra.mxu0 0.0
        %268 = vmatpush.xpose.msra.mxu0 0.0
        %269 = vmatpush.xpose.msra.mxu0 0.0
        %270 = vmatpush.xpose.msra.mxu0 0.0
        %271 = vmatpush.xpose.msra.mxu0 0.0
        %272 = vmatpush.xpose.msra.mxu0 %v255
        %273 = vmatmul.f32.gmra.mxu0 %v252
        %v274 = vpop.f32.mrf.mxu0
        %v275 = vadd.f32 0.0, %v274
        %276 = vdwg.mxu0
        %v281 = vperm.slane %v217, %v237
        %v282 = vperm.slane %v220, %v239
        %v283 = vsel %vm241, %v282, %v281
        %v284 = vperm.slane %v223, %v243
        %v285 = vsel %vm245, %v284, %v283
        %v286 = vperm.slane %v226, %v247
        %v287 = vsel %vm249, %v286, %v285
        %v288 = vsel %vm251, %v287, 0
        %290 = vmatpush.xpose.msra.mxu0 0.0
        %291 = vmatpush.xpose.msra.mxu0 0.0
        %292 = vmatpush.xpose.msra.mxu0 0.0
        %293 = vmatpush.xpose.msra.mxu0 0.0
        %294 = vmatpush.xpose.msra.mxu0 0.0
        %295 = vmatpush.xpose.msra.mxu0 0.0
        %296 = vmatpush.xpose.msra.mxu0 0.0
        %297 = vmatpush.xpose.msra.mxu0 0.0
        %298 = vmatpush.xpose.msra.mxu0 0.0
        %299 = vmatpush.xpose.msra.mxu0 0.0
        %300 = vmatpush.xpose.msra.mxu0 0.0
        %301 = vmatpush.xpose.msra.mxu0 0.0
        %302 = vmatpush.xpose.msra.mxu0 0.0
        %303 = vmatpush.xpose.msra.mxu0 0.0
        %304 = vmatpush.xpose.msra.mxu0 0.0
        %305 = vmatpush.xpose.msra.mxu0 %v255
        %306 = vmatmul.f32.gmra.mxu0 %v288
        %v307 = vpop.f32.mrf.mxu0
        %v308 = vadd.f32 0.0, %v307
        %309 = vdwg.mxu0
        %v310 = vmax.f32 %v275, 0.0
        %v311 = vmax.f32 %v308, 0.0
        %v312 = vadd.f32 %v310, %v311
        %vm313 = vcmask 31744
        %v315 = vsel %vm313, %v312, 0
        %v318 = vsel %vm313, %v228, 0
        %v321 = vsel %vm313, %v229, 0
        %v324 = vsel %vm313, %v230, 0
        %v327 = vsel %vm313, %v231, 0
        %329 = vmatpush.xpose.msra.mxu0 0.0
        %330 = vmatpush.xpose.msra.mxu0 0.0
        %331 = vmatpush.xpose.msra.mxu0 0.0
        %332 = vmatpush.xpose.msra.mxu0 0.0
        %333 = vmatpush.xpose.msra.mxu0 0.0
        %334 = vmatpush.xpose.msra.mxu0 0.0
        %335 = vmatpush.xpose.msra.mxu0 0.0
        %336 = vmatpush.xpose.msra.mxu0 0.0
        %337 = vmatpush.xpose.msra.mxu0 0.0
        %338 = vmatpush.xpose.msra.mxu0 0.0
        %339 = vmatpush.xpose.msra.mxu0 0.0
        %340 = vmatpush.xpose.msra.mxu0 0.0
        %341 = vmatpush.xpose.msra.mxu0 %v327
        %342 = vmatpush.xpose.msra.mxu0 %v324
        %343 = vmatpush.xpose.msra.mxu0 %v321
        %344 = vmatpush.xpose.msra.mxu0 %v318
        %345 = vmatmul.f32.gmra.mxu0 %v315
        %v346 = vpop.f32.mrf.mxu0
        %v347 = vadd.f32 0.0, %v346
        %348 = vdwg.mxu0
        %v349 = vxor.u32 %v347, 2147483648
        %v350 = vmul.f32 %v349, 1.442695
        %v351 = vpow.pop %v350
        %v352 = vadd.f32 %v351, 1.0
        %v353 = vrcp.pop %v352
        %v354 = vmul.f32 %v352, %v353
        %v355 = vsub.f32 1.0, %v354
        %v356 = vmul.f32 %v353, %v355
        %v357 = vadd.f32 %v353, %v356
        %vm358 = vweird.f32 %v352
        %vm359 = vweird.f32 %v353
        %vm360 = vmor %vm358, %vm359
        %v361 = vsel %vm360, %v353, %v357
        %v362 = vand.u32 2147483647, %v352
        %vm363 = vcmp.eq.f32.partialorder %v362, 8.507059e+37
        %v364 = vand.u32 %v352, 2147483648
        %v365 = vor.u32 1.1754944e-38, %v364
        %v366 = vsel %vm363, %v365, %v361
        %v367 = vmul.f32 1.0, %v366
        %v368 = vperm.slane %v367, 0
        %v369 = vlaneseq
        %v370 = vshrl.u32 %v369, 7
        %372 = vset.pattern.permute.xlu0 %v370
        %373 = vperm.xlu0 %372, %v368
        %v374 = vpop.permute.xlu0 %373
        %v375 = vlaneseq
        %v376 = vshrl.u32 %v375, 7
        %v377 = vadd.s32 %v376, 8
        %378 = vset.pattern.permute.xlu0 %v377
        %379 = vperm.xlu0 %378, %v368
        %v380 = vpop.permute.xlu0 %379
        %v381 = vlaneseq
        %v382 = vshrl.u32 %v381, 7
        %v383 = vadd.s32 %v382, 16
        %384 = vset.pattern.permute.xlu0 %v383
        %385 = vperm.xlu0 %384, %v368
        %v386 = vpop.permute.xlu0 %385
        %v387 = vlaneseq
        %v388 = vshrl.u32 %v387, 7
        %v389 = vadd.s32 %v388, 24
        %390 = vset.pattern.permute.xlu0 %v389
        %391 = vperm.xlu0 %390, %v368
        %v392 = vpop.permute.xlu0 %391
        %v393 = vmul.f32 %v191, %v374
        %v394 = vmul.f32 %v192, %v374
        %v395 = vmul.f32 %v193, %v380
        %v396 = vmul.f32 %v194, %v380
        %v397 = vmul.f32 %v195, %v386
        %v398 = vmul.f32 %v196, %v386
        %v399 = vmul.f32 %v197, %v392
        %v400 = vmul.f32 %v198, %v392
        %401 = vst [vmem:[%s190] sm:$0xff] %v393
        %402 = vst [vmem:[%s190 + $0x8] sm:$0xff] %v394
        %403 = vst [vmem:[%s190 + $0x10] sm:$0xff] %v395
        %404 = vst [vmem:[%s190 + $0x18] sm:$0xff] %v396
        %405 = vst [vmem:[%s190 + $0x20] sm:$0xff] %v397
        %406 = vst [vmem:[%s190 + $0x28] sm:$0xff] %v398
        %407 = vst [vmem:[%s190 + $0x30] sm:$0xff] %v399
        %408 = vst [vmem:[%s190 + $0x38] sm:$0xff] %v400
        %s409 = sand.u32 %s96, 1
        %s410 = scalar_lea.sflag [#allocation4], %s409
        %s411 = sand.u32 %s96, 1
        %s412 = smul.addr %s411, 64
        %s413 = scalar_lea.vmem [#allocation5], %s412
        // Predicated region
        $region37: #{tpu_custom_call.1} parent=31 // pred_check
          %p414 = pneg %p106
        $region38: #{tpu_custom_call.1} parent=31 // pred_check_branch
          %416 = sbr.rel (%p414) target = $region40
        $region39: #{tpu_custom_call.1} parent=31 // pred_region
          %418 = vsyncadd %s410, 0
          %s419 = smul.addr %s20, 8
          %s420 = smul.addr %s419, 8
          %s421 = scalar_lea.hbm %s3, %s420
          %s422 = sshll.u32 %s413, 4
          %s423 = int_to_ptr.vmem [resolvable:$true] %s422
          %s424 = sshll.u32 %s421, 4
          %s425 = int_to_ptr.hbm [resolvable:$true] %s424
          %430 = dma.vmem_to_hbm [thread:$0]  %s423, 1024, %s425, %s410, 256, 256, 16
        $region40: #{tpu_custom_call.1} parent=31 // pred_fallthru
          _
      $region32: #{tpu_custom_call.1} parent=5 // pred_fallthru
        _
      %p431 = scmp.le.s32.totalorder 2, %s15
      // Predicated region
      $region41: #{tpu_custom_call.1} parent=5 // pred_check
        %p432 = pneg %p431
      $region42: #{tpu_custom_call.1} parent=5 // pred_check_branch
        %434 = sbr.rel (%p432) target = $region44
      $region43: #{tpu_custom_call.1} parent=5 // pred_region
        %s435 = ssub.s32 %s15, 2
        // Predicated region
        $region45: #{tpu_custom_call.1} parent=43 // pred_check
          %p436 = pneg %p112
        $region46: #{tpu_custom_call.1} parent=43 // pred_check_branch
          %438 = sbr.rel (%p436) target = $region48
        $region47: #{tpu_custom_call.1} parent=43 // pred_region
          %s439 = sand.u32 %s97, 1
          %s440 = scalar_lea.sflag [#allocation4], %s439
          %s441 = sand.u32 %s97, 1
          %s442 = smul.addr %s441, 64
          %s443 = scalar_lea.vmem [#allocation5], %s442
          %445 = dma.done %s440, 1024
        $region48: #{tpu_custom_call.1} parent=43 // pred_fallthru
          _
      $region44: #{tpu_custom_call.1} parent=5 // pred_fallthru
        _
    $region6: #{tpu_custom_call.1} parent=1 // loop_footer
      %s19 = sadd.s32 1, %s15
    $region7: #{tpu_custom_call.1} parent=1 // loop_footer_branch
      %14 = sbr.rel target = $region3
    $region8: #{tpu_custom_call.1} parent=1 // loop_exit
      _
    %446 = vsyncpa [#allocation3], 1
    %s447 = scalar_lea.sflag [#allocation3], 1
    %448 = vsyncpa %s447, 1
    %449 = vsyncpa [#allocation4], 1
    %s450 = scalar_lea.sflag [#allocation4], 1
    %451 = vsyncpa %s450, 1

</llo_original>
